<compile_context>
chip_gen: v6e
topology: v6e:2x2x1
jax: 0.10.0
libtpu: 0.0.40
codegen_flags: <defaults>
</compile_context>

<pallas_src>
import math

import jax
import jax.numpy as jnp
from jax.experimental import pallas as pl
from jax.experimental.pallas import tpu as pltpu


def _mlp_kernel(x_ref, w1_ref, b1_ref, w2_ref, b2_ref, o_ref):
    """out = tanh(relu(x @ W1 + b1) @ W2 + b2).

    Used both for the single-shot call (w2_ref / b2_ref / o_ref are the full
    arrays) and for the column-tiled call (they are lane-dense column tiles).
    The hidden layer is recomputed per tile in the tiled case, so there is no
    carried state and the grid axis can be marked "parallel".
    """
    h = jnp.dot(x_ref[...], w1_ref[...], preferred_element_type=jnp.float32)
    h = jnp.maximum(h + b1_ref[...], 0.0)          # ReLU, f32 accumulator
    h = h.astype(w2_ref.dtype)                     # bf16 operands for the MXU
    out = jnp.dot(h, w2_ref[...], preferred_element_type=jnp.float32)
    o_ref[...] = jnp.tanh(out + b2_ref[...]).astype(o_ref.dtype)


def hrrp_to_pseudo_image(x, w1, b1, w2, b2, output_channels, output_size, *,
                         compute_dtype=jnp.bfloat16, tn=256, force_tiled=False):
    """x: (B, C_in, L). Returns (B, output_channels, output_size, output_size)."""
    B = x.shape[0]
    x_flat = x.reshape(B, -1)                      # Flatten (glue, plain JAX)
    d_in = x_flat.shape[1]
    d_mid = w1.shape[1]
    d_out = w2.shape[1]
    out_dtype = x.dtype

    # Pad batch to a full sublane group (8); padded rows are sliced off after.
    Bp = max(8, ((B + 7) // 8) * 8)
    if Bp != B:
        x_flat = jnp.pad(x_flat, ((0, Bp - B), (0, 0)))

    # bf16 operands (halves W1/W2 HBM->VMEM bytes), f32 biases + accumulation.
    x_c = x_flat.astype(compute_dtype)
    w1_c = w1.astype(compute_dtype)
    w2_c = w2.astype(compute_dtype)
    b1_2d = b1.reshape(1, d_mid).astype(jnp.float32)
    b2_2d = b2.reshape(1, d_out).astype(jnp.float32)

    itemsize = jnp.dtype(compute_dtype).itemsize
    out_itemsize = jnp.dtype(out_dtype).itemsize
    cost = pl.CostEstimate(
        flops=2 * Bp * (d_in * d_mid + d_mid * d_out),
        transcendentals=Bp * d_out,  # tanh
        bytes_accessed=(Bp * d_in + d_in * d_mid + d_mid * d_out) * itemsize
        + (d_mid + d_out) * 4
        + Bp * d_out * out_itemsize,
    )

    # Everything-resident VMEM footprint (inputs + hidden + f32 pre-tanh + out).
    # Stay well under the default scoped VMEM (16 MiB v5e / 32 MiB v6e,v7x).
    fused_bytes = (
        (Bp * d_in + d_in * d_mid + d_mid * d_out) * itemsize
        + (d_mid + d_out) * 4
        + Bp * d_mid * 4
        + Bp * d_out * (4 + out_itemsize)
    )
    use_fused = (not force_tiled) and fused_bytes < 12 * 1024 * 1024

    if use_fused:
        # Single invocation, no grid: whole arrays resident in VMEM, one DMA in,
        # one lane-dense DMA out, zero per-step grid overhead.
        out_flat = pl.pallas_call(
            _mlp_kernel,
            out_shape=jax.ShapeDtypeStruct((Bp, d_out), out_dtype),
            cost_estimate=cost,
        )(x_c, w1_c, b1_2d, w2_c, b2_2d)
    else:
        # Column-tiled fallback for large d_out: W2/b2/out tiled along the
        # output features; hidden recomputed per tile (trivial) so the grid
        # axis carries no state and can be sharded across TensorCores.
        tn = min(tn, d_out)
        assert d_out % tn == 0, "output feature dim must be divisible by tile width"
        out_flat = pl.pallas_call(
            _mlp_kernel,
            out_shape=jax.ShapeDtypeStruct((Bp, d_out), out_dtype),
            grid=(d_out // tn,),
            in_specs=[
                pl.BlockSpec((Bp, d_in), lambda j: (0, 0)),      # x (resident)
                pl.BlockSpec((d_in, d_mid), lambda j: (0, 0)),   # W1 (resident)
                pl.BlockSpec((1, d_mid), lambda j: (0, 0)),      # b1 (resident)
                pl.BlockSpec((d_mid, tn), lambda j: (0, j)),     # W2 column tile
                pl.BlockSpec((1, tn), lambda j: (0, j)),         # b2 tile
            ],
            out_specs=pl.BlockSpec((Bp, tn), lambda j: (0, j)),
            compiler_params=pltpu.CompilerParams(
                dimension_semantics=("parallel",),   # no carried scratch -> megacore-safe
            ),
            cost_estimate=cost,
        )(x_c, w1_c, b1_2d, w2_c, b2_2d)

    # Drop batch padding, Unflatten (glue, plain JAX) -> NCHW.
    out_flat = out_flat[:B]
    return out_flat.reshape(B, output_channels, output_size, output_size)


def init_params(key, d_in, d_mid, d_out):
    """Deterministic PyTorch-like (fan-in uniform) init.

    Stored as (in_features, out_features) so the kernel does x @ W directly.
    """
    k1, k2, k3, k4 = jax.random.split(key, 4)
    bound1 = 1.0 / math.sqrt(d_in)
    bound2 = 1.0 / math.sqrt(d_mid)
    w1 = jax.random.uniform(k1, (d_in, d_mid), jnp.float32, -bound1, bound1)
    b1 = jax.random.uniform(k2, (d_mid,), jnp.float32, -bound1, bound1)
    w2 = jax.random.uniform(k3, (d_mid, d_out), jnp.float32, -bound2, bound2)
    b2 = jax.random.uniform(k4, (d_out,), jnp.float32, -bound2, bound2)
    return w1, b1, w2, b2


if __name__ == "__main__":
    # Small, module-consistent shapes:
    #   hrrp_length=128, input_channels=1, intermediate_dim=256,
    #   output_channels=3, output_size=16  ->  target_elements = 3*16*16 = 768
    B = 2
    C_IN, L = 1, 128
    D_MID = 256
    C_OUT, OUT_SIZE = 3, 16
    D_IN = C_IN * L
    D_OUT = C_OUT * OUT_SIZE * OUT_SIZE

    key = jax.random.PRNGKey(0)
    kx, kp = jax.random.split(key)
    x = jax.random.normal(kx, (B, C_IN, L), jnp.float32)
    w1, b1, w2, b2 = init_params(kp, D_IN, D_MID, D_OUT)

    # Fused single-invocation path (default for these shapes).
    out = hrrp_to_pseudo_image(x, w1, b1, w2, b2, C_OUT, OUT_SIZE)
    out = jax.block_until_ready(out)
    assert out.shape == (B, C_OUT, OUT_SIZE, OUT_SIZE)

    # Reference with identical bf16 operand casting + f32 accumulation.
    xb = x.reshape(B, -1).astype(jnp.bfloat16)
    w1b, w2b = w1.astype(jnp.bfloat16), w2.astype(jnp.bfloat16)
    h_ref = jnp.maximum(
        jnp.dot(xb, w1b, preferred_element_type=jnp.float32) + b1, 0.0
    ).astype(jnp.bfloat16)
    ref = jnp.tanh(jnp.dot(h_ref, w2b, preferred_element_type=jnp.float32) + b2)
    ref = ref.reshape(B, C_OUT, OUT_SIZE, OUT_SIZE)
    assert jnp.allclose(out, ref, atol=1e-2, rtol=1e-2)

    # Sanity check against the full-f32 PyTorch-equivalent forward
    # (tolerance covers bf16 weight/activation rounding; tanh output is in [-1, 1]).
    ref32 = jnp.tanh(jnp.maximum(x.reshape(B, -1) @ w1 + b1, 0.0) @ w2 + b2)
    ref32 = ref32.reshape(B, C_OUT, OUT_SIZE, OUT_SIZE)
    assert jnp.allclose(out, ref32, atol=5e-2)

    # Exercise the column-tiled fallback path as well (same kernel body).
    out_t = hrrp_to_pseudo_image(
        x, w1, b1, w2, b2, C_OUT, OUT_SIZE, force_tiled=True, tn=256
    )
    out_t = jax.block_until_ready(out_t)
    assert jnp.allclose(out_t, ref, atol=1e-2, rtol=1e-2)

    print("KERNEL_OK")
</pallas_src>

<mosaic_0001>
module attributes {stable_mosaic.version = 11 : i64} {
  func.func @_mlp_kernel(%arg0: memref<8x128xbf16, #tpu.memory_space<vmem>>, %arg1: memref<128x256xbf16, #tpu.memory_space<vmem>>, %arg2: memref<1x256xf32, #tpu.memory_space<vmem>>, %arg3: memref<256x768xbf16, #tpu.memory_space<vmem>>, %arg4: memref<1x768xf32, #tpu.memory_space<vmem>>, %arg5: memref<8x768xf32, #tpu.memory_space<vmem>>) attributes {dimension_semantics = [], scalar_prefetch = 0 : i64, scratch_operands = 0 : i64, tpu.core_type = #tpu.core_type<tc>} {
    %c0 = arith.constant 0 : index
    %c0_0 = arith.constant 0 : index
    %0 = vector.load %arg0[%c0, %c0_0] : memref<8x128xbf16, #tpu.memory_space<vmem>>, vector<8x128xbf16>
    %c0_1 = arith.constant 0 : index
    %c0_2 = arith.constant 0 : index
    %1 = vector.load %arg1[%c0_1, %c0_2] : memref<128x256xbf16, #tpu.memory_space<vmem>>, vector<128x256xbf16>
    %cst = arith.constant dense<0.000000e+00> : vector<8x256xf32>
    %2 = tpu.matmul %0, %1, %cst {dimension_numbers = #tpu.dot_dimension_numbers<[1], [0], [0], [1], [0, 0, 1, 1], [], []>} : vector<8x128xbf16>, vector<128x256xbf16>, vector<8x256xf32> -> vector<8x256xf32>
    %c0_3 = arith.constant 0 : index
    %c0_4 = arith.constant 0 : index
    %3 = vector.load %arg2[%c0_3, %c0_4] : memref<1x256xf32, #tpu.memory_space<vmem>>, vector<1x256xf32>
    %4 = vector.broadcast %3 : vector<1x256xf32> to vector<8x256xf32>
    %5 = arith.addf %2, %4 : vector<8x256xf32>
    %cst_5 = arith.constant 0.000000e+00 : f32
    %6 = vector.broadcast %cst_5 : f32 to vector<8x256xf32>
    %7 = arith.maximumf %5, %6 : vector<8x256xf32>
    %8 = arith.truncf %7 : vector<8x256xf32> to vector<8x256xbf16>
    %c0_6 = arith.constant 0 : index
    %c0_7 = arith.constant 0 : index
    %9 = vector.load %arg3[%c0_6, %c0_7] : memref<256x768xbf16, #tpu.memory_space<vmem>>, vector<256x768xbf16>
    %cst_8 = arith.constant dense<0.000000e+00> : vector<8x768xf32>
    %10 = tpu.matmul %8, %9, %cst_8 {dimension_numbers = #tpu.dot_dimension_numbers<[1], [0], [0], [1], [0, 0, 1, 1], [], []>} : vector<8x256xbf16>, vector<256x768xbf16>, vector<8x768xf32> -> vector<8x768xf32>
    %c0_9 = arith.constant 0 : index
    %c0_10 = arith.constant 0 : index
    %11 = vector.load %arg4[%c0_9, %c0_10] : memref<1x768xf32, #tpu.memory_space<vmem>>, vector<1x768xf32>
    %12 = vector.broadcast %11 : vector<1x768xf32> to vector<8x768xf32>
    %13 = arith.addf %10, %12 : vector<8x768xf32>
    %14 = math.tanh %13 : vector<8x768xf32>
    %c0_11 = arith.constant 0 : index
    %c0_12 = arith.constant 0 : index
    %15 = vector.load %arg5[%c0_11, %c0_12] : memref<8x768xf32, #tpu.memory_space<vmem>>, vector<8x768xf32>
    tpu.vector_store %arg5[%c0_11, %c0_12], %14 {strides = array<i32>} : memref<8x768xf32, #tpu.memory_space<vmem>>, vector<8x768xf32>,
    return
  }
}

</mosaic_0001>

<llo_original>
// kernel: tpu_custom_call.1
$region0: #{tpu_custom_call.1}
  #allocation0 [shape = 'u32[]', space=smem, size = 0x4, offset = 0x4, fixed_abs, tag = 'smem constant byte address 0x4 - core index']
  #allocation1 [shape = 'u32[144,128]{1,0:T(1,128)}', space=vmem, size = 0x12000, scoped, tag = 'internal scratch']
  %s0 = inlined_call_operand.hbm [shape: bf16[8,128], index: 0, kind: input, shape index: {}]
  %s1 = inlined_call_operand.hbm [shape: bf16[128,256], index: 1, kind: input, shape index: {}]
  %s2 = inlined_call_operand.hbm [shape: f32[1,256], index: 2, kind: input, shape index: {}]
  %s3 = inlined_call_operand.hbm [shape: bf16[256,768], index: 3, kind: input, shape index: {}]
  %s4 = inlined_call_operand.vmem [shape: f32[1,768], index: 4, kind: input, shape index: {}]
  %s5 = inlined_call_operand.hbm [shape: f32[8,768], index: 5, kind: output, shape index: {}]
  %s6 = sld [smem:[#allocation0]]
  $region46: #{tpu_custom_call.1} parent=0
    _
  %s8 = ssub.s32 1, %s6
  %s9 = scalar_select 0, %s8, %s6
  $region1: #{tpu_custom_call.1} parent=0
    #allocation2 [shape = 'u8[2048]{0}', space=vmem, size = 0x800, scoped, tag = 'input window, operand 0, single buffered']
    #allocation3 [shape = 's32[1]{0}', space=sflag, size = 0x4, scoped, tag = 'scoped memory for tpu_custom_call.1']
    #allocation4 [shape = 's32[1]{0}', space=sflag, size = 0x4, scoped, tag = 'scoped memory for tpu_custom_call.1']
    #allocation5 [shape = 'u8[65536]{0}', space=vmem, size = 0x10000, scoped, tag = 'input window, operand 1, single buffered']
    #allocation6 [shape = 's32[1]{0}', space=sflag, size = 0x4, scoped, tag = 'scoped memory for tpu_custom_call.1']
    #allocation7 [shape = 'u8[1024]{0}', space=vmem, size = 0x400, scoped, tag = 'input window, operand 2, single buffered']
    #allocation8 [shape = 'u8[393216]{0}', space=vmem, size = 0x60000, scoped, tag = 'input window, operand 3, single buffered']
    #allocation9 [shape = 's32[1]{0}', space=sflag, size = 0x4, scoped, tag = 'scoped memory for tpu_custom_call.1']
    #allocation10 [shape = 'u8[24576]{0}', space=vmem, size = 0x6000, scoped, tag = 'output window, operand 0, single buffered']
    %10 = vsyncpa [#allocation3], 0
    %11 = vsyncpa [#allocation6], 0
    %12 = vsyncpa [#allocation9], 0
    %13 = vsyncpa [#allocation4], 0
    // Predicated region
    $region2: #{tpu_custom_call.1} parent=1 // pred_check
      _
    $region3: #{tpu_custom_call.1} parent=1 // pred_check_branch
      %15 = sbr.rel (0) target = $region5
    $region4: #{tpu_custom_call.1} parent=1 // pred_region
      %s17 = ssub.s32 64, 64
      %18 = vsyncadd [#allocation3], %s17
      %s20 = sshll.u32 [#allocation2], 4
      %s21 = int_to_ptr.vmem [resolvable:$true] %s20
      %23 = dma.hbm_to_vmem [thread:$0]  %s0, 64, %s21, [#allocation3]
    $region5: #{tpu_custom_call.1} parent=1 // pred_fallthru
      _
    // Predicated region
    $region6: #{tpu_custom_call.1} parent=1 // pred_check
      _
    $region7: #{tpu_custom_call.1} parent=1 // pred_check_branch
      %25 = sbr.rel (0) target = $region9
    $region8: #{tpu_custom_call.1} parent=1 // pred_region
      %s27 = ssub.s32 2048, 2048
      %28 = vsyncadd [#allocation6], %s27
      %s29 = sshll.u32 [#allocation5], 4
      %s30 = int_to_ptr.vmem [resolvable:$true] %s29
      %35 = dma.hbm_to_vmem [thread:$0]  %s1, 2048, %s30, [#allocation6], 128, 128, 8
    $region9: #{tpu_custom_call.1} parent=1 // pred_fallthru
      _
    // Predicated region
    $region10: #{tpu_custom_call.1} parent=1 // pred_check
      _
    $region11: #{tpu_custom_call.1} parent=1 // pred_check_branch
      %37 = sbr.rel (0) target = $region13
    $region12: #{tpu_custom_call.1} parent=1 // pred_region
      %s39 = ssub.s32 32, 32
      %40 = vsyncadd [#allocation6], %s39
      %s42 = sshll.u32 [#allocation7], 4
      %s43 = int_to_ptr.vmem [resolvable:$true] %s42
      %45 = dma.hbm_to_vmem [thread:$0]  %s2, 32, %s43, [#allocation6]
    $region13: #{tpu_custom_call.1} parent=1 // pred_fallthru
      _
    // Predicated region
    $region14: #{tpu_custom_call.1} parent=1 // pred_check
      _
    $region15: #{tpu_custom_call.1} parent=1 // pred_check_branch
      %47 = sbr.rel (0) target = $region17
    $region16: #{tpu_custom_call.1} parent=1 // pred_region
      %s49 = ssub.s32 12288, 12288
      %50 = vsyncadd [#allocation9], %s49
      %s51 = sshll.u32 [#allocation8], 4
      %s52 = int_to_ptr.vmem [resolvable:$true] %s51
      %57 = dma.hbm_to_vmem [thread:$0]  %s3, 12288, %s52, [#allocation9], 384, 384, 24
    $region17: #{tpu_custom_call.1} parent=1 // pred_fallthru
      _
    // Predicated region
    $region18: #{tpu_custom_call.1} parent=1 // pred_check
      _
    $region19: #{tpu_custom_call.1} parent=1 // pred_check_branch
      %59 = sbr.rel (0) target = $region21
    $region20: #{tpu_custom_call.1} parent=1 // pred_region
      _
    $region21: #{tpu_custom_call.1} parent=1 // pred_fallthru
      _
    // Predicated region
    $region22: #{tpu_custom_call.1} parent=1 // pred_check
      _
    $region23: #{tpu_custom_call.1} parent=1 // pred_check_branch
      %61 = sbr.rel (0) target = $region25
    $region24: #{tpu_custom_call.1} parent=1 // pred_region
      %62 = dma.done [#allocation3], 64
    $region25: #{tpu_custom_call.1} parent=1 // pred_fallthru
      _
    // Predicated region
    $region26: #{tpu_custom_call.1} parent=1 // pred_check
      _
    $region27: #{tpu_custom_call.1} parent=1 // pred_check_branch
      %64 = sbr.rel (0) target = $region29
    $region28: #{tpu_custom_call.1} parent=1 // pred_region
      %65 = dma.done [#allocation6], 2048
    $region29: #{tpu_custom_call.1} parent=1 // pred_fallthru
      _
    // Predicated region
    $region30: #{tpu_custom_call.1} parent=1 // pred_check
      _
    $region31: #{tpu_custom_call.1} parent=1 // pred_check_branch
      %67 = sbr.rel (0) target = $region33
    $region32: #{tpu_custom_call.1} parent=1 // pred_region
      %68 = dma.done [#allocation6], 32
    $region33: #{tpu_custom_call.1} parent=1 // pred_fallthru
      _
    // Predicated region
    $region34: #{tpu_custom_call.1} parent=1 // pred_check
      _
    $region35: #{tpu_custom_call.1} parent=1 // pred_check_branch
      %70 = sbr.rel (0) target = $region37
    $region36: #{tpu_custom_call.1} parent=1 // pred_region
      %71 = dma.done [#allocation9], 12288
    $region37: #{tpu_custom_call.1} parent=1 // pred_fallthru
      _
    %v73 = vld [vmem:[#allocation2] sm:$0xf]
    %v74 = vld [vmem:[#allocation5] sm:$0xff]
    %v75 = vld [vmem:[#allocation5 + $0x8] sm:$0xff]
    %v76 = vld [vmem:[#allocation5 + $0x10] sm:$0xff]
    %v77 = vld [vmem:[#allocation5 + $0x18] sm:$0xff]
    %v78 = vld [vmem:[#allocation5 + $0x20] sm:$0xff]
    %v79 = vld [vmem:[#allocation5 + $0x28] sm:$0xff]
    %v80 = vld [vmem:[#allocation5 + $0x30] sm:$0xff]
    %v81 = vld [vmem:[#allocation5 + $0x38] sm:$0xff]
    %v82 = vld [vmem:[#allocation5 + $0x40] sm:$0xff]
    %v83 = vld [vmem:[#allocation5 + $0x48] sm:$0xff]
    %v84 = vld [vmem:[#allocation5 + $0x50] sm:$0xff]
    %v85 = vld [vmem:[#allocation5 + $0x58] sm:$0xff]
    %v86 = vld [vmem:[#allocation5 + $0x60] sm:$0xff]
    %v87 = vld [vmem:[#allocation5 + $0x68] sm:$0xff]
    %v88 = vld [vmem:[#allocation5 + $0x70] sm:$0xff]
    %v89 = vld [vmem:[#allocation5 + $0x78] sm:$0xff]
    %v90 = vld [vmem:[#allocation7] sm:$0x3]
    %v92 = vlaneseq
    %v93 = vshrl.u32 %v92, 7
    %v94 = vsub.s32 0, %v93
    %v95 = vrot.slane %v90, %v94
    %v96 = vlaneseq
    %v97 = vshrl.u32 %v96, 7
    %v98 = vsub.s32 1, %v97
    %v99 = vrot.slane %v90, %v98
    %v118 = vunpack.c.l.b16 %v74
    %v119 = vunpack.c.h.b16 %v74
    %v120 = vunpack.c.l.b16 %v75
    %v121 = vunpack.c.h.b16 %v75
    %v122 = vunpack.c.l.b16 %v76
    %v123 = vunpack.c.h.b16 %v76
    %v124 = vunpack.c.l.b16 %v77
    %v125 = vunpack.c.h.b16 %v77
    %v126 = vunpack.c.l.b16 %v78
    %v127 = vunpack.c.h.b16 %v78
    %v128 = vunpack.c.l.b16 %v79
    %v129 = vunpack.c.h.b16 %v79
    %v130 = vunpack.c.l.b16 %v80
    %v131 = vunpack.c.h.b16 %v80
    %v132 = vunpack.c.l.b16 %v81
    %v133 = vunpack.c.h.b16 %v81
    %v134 = vunpack.c.l.b16 %v82
    %v135 = vunpack.c.h.b16 %v82
    %v136 = vunpack.c.l.b16 %v83
    %v137 = vunpack.c.h.b16 %v83
    %v138 = vunpack.c.l.b16 %v84
    %v139 = vunpack.c.h.b16 %v84
    %v140 = vunpack.c.l.b16 %v85
    %v141 = vunpack.c.h.b16 %v85
    %v142 = vunpack.c.l.b16 %v86
    %v143 = vunpack.c.h.b16 %v86
    %v144 = vunpack.c.l.b16 %v87
    %v145 = vunpack.c.h.b16 %v87
    %v146 = vunpack.c.l.b16 %v88
    %v147 = vunpack.c.h.b16 %v88
    %v148 = vunpack.c.l.b16 %v89
    %v149 = vunpack.c.h.b16 %v89
    %v150 = vpack.c.b16 %v120, %v118
    %v151 = vpack.c.b16 %v121, %v119
    %v152 = vpack.c.b16 %v124, %v122
    %v153 = vpack.c.b16 %v125, %v123
    %v154 = vpack.c.b16 %v128, %v126
    %v155 = vpack.c.b16 %v129, %v127
    %v156 = vpack.c.b16 %v132, %v130
    %v157 = vpack.c.b16 %v133, %v131
    %v158 = vpack.c.b16 %v136, %v134
    %v159 = vpack.c.b16 %v137, %v135
    %v160 = vpack.c.b16 %v140, %v138
    %v161 = vpack.c.b16 %v141, %v139
    %v162 = vpack.c.b16 %v144, %v142
    %v163 = vpack.c.b16 %v145, %v143
    %v164 = vpack.c.b16 %v148, %v146
    %v165 = vpack.c.b16 %v149, %v147
    %182 = vmatprep.subr.bf16.mxu0 %v165
    %183 = vmatpush1.bf16.msra.mxu0 %v164
    %184 = vmatprep.subr.bf16.mxu0 %v163
    %185 = vmatpush1.bf16.msra.mxu0 %v162
    %186 = vmatprep.subr.bf16.mxu0 %v161
    %187 = vmatpush1.bf16.msra.mxu0 %v160
    %188 = vmatprep.subr.bf16.mxu0 %v159
    %189 = vmatpush1.bf16.msra.mxu0 %v158
    %190 = vmatprep.subr.bf16.mxu0 %v157
    %191 = vmatpush1.bf16.msra.mxu0 %v156
    %192 = vmatprep.subr.bf16.mxu0 %v155
    %193 = vmatpush1.bf16.msra.mxu0 %v154
    %194 = vmatprep.subr.bf16.mxu0 %v153
    %195 = vmatpush1.bf16.msra.mxu0 %v152
    %196 = vmatprep.subr.bf16.mxu0 %v151
    %197 = vmatpush1.bf16.msra.mxu0 %v150
    %198 = vmatprep.subr.bf16.mxu0 0
    %199 = vmatpush2.bf16.msra.mxu0 0
    %200 = vmatprep.subr.bf16.mxu0 0
    %201 = vmatpush2.bf16.msra.mxu0 0
    %202 = vmatprep.subr.bf16.mxu0 0
    %203 = vmatpush2.bf16.msra.mxu0 0
    %204 = vmatprep.subr.bf16.mxu0 0
    %205 = vmatpush2.bf16.msra.mxu0 0
    %206 = vmatprep.subr.bf16.mxu0 0
    %207 = vmatpush2.bf16.msra.mxu0 0
    %208 = vmatprep.subr.bf16.mxu0 0
    %209 = vmatpush2.bf16.msra.mxu0 0
    %210 = vmatprep.subr.bf16.mxu0 0
    %211 = vmatpush2.bf16.msra.mxu0 0
    %212 = vmatprep.subr.bf16.mxu0 0
    %213 = vmatpush2.bf16.msra.mxu0 0
    %214 = vmatprep.mubr.bf16.mxu0 0
    %215 = vmatmul.mubr.bf16.gmra.mxu0 %v73
    %v216 = vpop.f32.mrf.mxu0
    %v217 = vadd.f32 %v95, %v216
    %v218 = vpop.f32.mrf.mxu0
    %v219 = vadd.f32 %v99, %v218
    %v220 = vpop.f32.mrf.mxu0
    %v221 = vpop.f32.mrf.mxu0
    %222 = vdwg.mxu0
    %v223 = vmax.f32 %v217, 0.0
    %v224 = vmax.f32 %v219, 0.0
    %v225 = vpack.c.bf16 %v223, %v223
    %v226 = vpack.c.bf16 %v224, %v224
    %v227 = vld [vmem:[#allocation8] sm:$0xff]
    %v228 = vld [vmem:[#allocation8 + $0x8] sm:$0xff]
    %v229 = vld [vmem:[#allocation8 + $0x10] sm:$0xff]
    %v230 = vld [vmem:[#allocation8 + $0x18] sm:$0xff]
    %v231 = vld [vmem:[#allocation8 + $0x20] sm:$0xff]
    %v232 = vld [vmem:[#allocation8 + $0x28] sm:$0xff]
    %v233 = vld [vmem:[#allocation8 + $0x30] sm:$0xff]
    %v234 = vld [vmem:[#allocation8 + $0x38] sm:$0xff]
    %v235 = vld [vmem:[#allocation8 + $0x40] sm:$0xff]
    %v236 = vld [vmem:[#allocation8 + $0x48] sm:$0xff]
    %v237 = vld [vmem:[#allocation8 + $0x50] sm:$0xff]
    %v238 = vld [vmem:[#allocation8 + $0x58] sm:$0xff]
    %v239 = vld [vmem:[#allocation8 + $0x60] sm:$0xff]
    %v240 = vld [vmem:[#allocation8 + $0x68] sm:$0xff]
    %v241 = vld [vmem:[#allocation8 + $0x70] sm:$0xff]
    %v242 = vld [vmem:[#allocation8 + $0x78] sm:$0xff]
    %v243 = vld [vmem:[#allocation8 + $0x80] sm:$0xff]
    %v244 = vld [vmem:[#allocation8 + $0x88] sm:$0xff]
    %v245 = vld [vmem:[#allocation8 + $0x90] sm:$0xff]
    %v246 = vld [vmem:[#allocation8 + $0x98] sm:$0xff]
    %v247 = vld [vmem:[#allocation8 + $0xa0] sm:$0xff]
    %v248 = vld [vmem:[#allocation8 + $0xa8] sm:$0xff]
    %v249 = vld [vmem:[#allocation8 + $0xb0] sm:$0xff]
    %v250 = vld [vmem:[#allocation8 + $0xb8] sm:$0xff]
    %v251 = vld [vmem:[#allocation8 + $0xc0] sm:$0xff]
    %v252 = vld [vmem:[#allocation8 + $0xc8] sm:$0xff]
    %v253 = vld [vmem:[#allocation8 + $0xd0] sm:$0xff]
    %v254 = vld [vmem:[#allocation8 + $0xd8] sm:$0xff]
    %v255 = vld [vmem:[#allocation8 + $0xe0] sm:$0xff]
    %v256 = vld [vmem:[#allocation8 + $0xe8] sm:$0xff]
    %v257 = vld [vmem:[#allocation8 + $0xf0] sm:$0xff]
    %v258 = vld [vmem:[#allocation8 + $0xf8] sm:$0xff]
    %v259 = vld [vmem:[#allocation8 + $0x100] sm:$0xff]
    %v260 = vld [vmem:[#allocation8 + $0x108] sm:$0xff]
    %v261 = vld [vmem:[#allocation8 + $0x110] sm:$0xff]
    %v262 = vld [vmem:[#allocation8 + $0x118] sm:$0xff]
    %v263 = vld [vmem:[#allocation8 + $0x120] sm:$0xff]
    %v264 = vld [vmem:[#allocation8 + $0x128] sm:$0xff]
    %v265 = vld [vmem:[#allocation8 + $0x130] sm:$0xff]
    %v266 = vld [vmem:[#allocation8 + $0x138] sm:$0xff]
    %v267 = vld [vmem:[#allocation8 + $0x140] sm:$0xff]
    %v268 = vld [vmem:[#allocation8 + $0x148] sm:$0xff]
    %v269 = vld [vmem:[#allocation8 + $0x150] sm:$0xff]
    %v270 = vld [vmem:[#allocation8 + $0x158] sm:$0xff]
    %v271 = vld [vmem:[#allocation8 + $0x160] sm:$0xff]
    %v272 = vld [vmem:[#allocation8 + $0x168] sm:$0xff]
    %v273 = vld [vmem:[#allocation8 + $0x170] sm:$0xff]
    %v274 = vld [vmem:[#allocation8 + $0x178] sm:$0xff]
    %v275 = vld [vmem:[#allocation8 + $0x180] sm:$0xff]
    %v276 = vld [vmem:[#allocation8 + $0x188] sm:$0xff]
    %v277 = vld [vmem:[#allocation8 + $0x190] sm:$0xff]
    %v278 = vld [vmem:[#allocation8 + $0x198] sm:$0xff]
    %v279 = vld [vmem:[#allocation8 + $0x1a0] sm:$0xff]
    %v280 = vld [vmem:[#allocation8 + $0x1a8] sm:$0xff]
    %v281 = vld [vmem:[#allocation8 + $0x1b0] sm:$0xff]
    %v282 = vld [vmem:[#allocation8 + $0x1b8] sm:$0xff]
    %v283 = vld [vmem:[#allocation8 + $0x1c0] sm:$0xff]
    %v284 = vld [vmem:[#allocation8 + $0x1c8] sm:$0xff]
    %v285 = vld [vmem:[#allocation8 + $0x1d0] sm:$0xff]
    %v286 = vld [vmem:[#allocation8 + $0x1d8] sm:$0xff]
    %v287 = vld [vmem:[#allocation8 + $0x1e0] sm:$0xff]
    %v288 = vld [vmem:[#allocation8 + $0x1e8] sm:$0xff]
    %v289 = vld [vmem:[#allocation8 + $0x1f0] sm:$0xff]
    %v290 = vld [vmem:[#allocation8 + $0x1f8] sm:$0xff]
    %v291 = vld [vmem:[#allocation8 + $0x200] sm:$0xff]
    %v292 = vld [vmem:[#allocation8 + $0x208] sm:$0xff]
    %v293 = vld [vmem:[#allocation8 + $0x210] sm:$0xff]
    %v294 = vld [vmem:[#allocation8 + $0x218] sm:$0xff]
    %v295 = vld [vmem:[#allocation8 + $0x220] sm:$0xff]
    %v296 = vld [vmem:[#allocation8 + $0x228] sm:$0xff]
    %v297 = vld [vmem:[#allocation8 + $0x230] sm:$0xff]
    %v298 = vld [vmem:[#allocation8 + $0x238] sm:$0xff]
    %v299 = vld [vmem:[#allocation8 + $0x240] sm:$0xff]
    %v300 = vld [vmem:[#allocation8 + $0x248] sm:$0xff]
    %v301 = vld [vmem:[#allocation8 + $0x250] sm:$0xff]
    %v302 = vld [vmem:[#allocation8 + $0x258] sm:$0xff]
    %v303 = vld [vmem:[#allocation8 + $0x260] sm:$0xff]
    %v304 = vld [vmem:[#allocation8 + $0x268] sm:$0xff]
    %v305 = vld [vmem:[#allocation8 + $0x270] sm:$0xff]
    %v306 = vld [vmem:[#allocation8 + $0x278] sm:$0xff]
    %v307 = vld [vmem:[#allocation8 + $0x280] sm:$0xff]
    %v308 = vld [vmem:[#allocation8 + $0x288] sm:$0xff]
    %v309 = vld [vmem:[#allocation8 + $0x290] sm:$0xff]
    %v310 = vld [vmem:[#allocation8 + $0x298] sm:$0xff]
    %v311 = vld [vmem:[#allocation8 + $0x2a0] sm:$0xff]
    %v312 = vld [vmem:[#allocation8 + $0x2a8] sm:$0xff]
    %v313 = vld [vmem:[#allocation8 + $0x2b0] sm:$0xff]
    %v314 = vld [vmem:[#allocation8 + $0x2b8] sm:$0xff]
    %v315 = vld [vmem:[#allocation8 + $0x2c0] sm:$0xff]
    %v316 = vld [vmem:[#allocation8 + $0x2c8] sm:$0xff]
    %v317 = vld [vmem:[#allocation8 + $0x2d0] sm:$0xff]
    %v318 = vld [vmem:[#allocation8 + $0x2d8] sm:$0xff]
    %v319 = vld [vmem:[#allocation8 + $0x2e0] sm:$0xff]
    %v320 = vld [vmem:[#allocation8 + $0x2e8] sm:$0xff]
    %v321 = vld [vmem:[#allocation8 + $0x2f0] sm:$0xff]
    %v322 = vld [vmem:[#allocation8 + $0x2f8] sm:$0xff]
    %v323 = vld [vmem:[%s4] sm:$0x3f]
    %v325 = vlaneseq
    %v326 = vshrl.u32 %v325, 7
    %v327 = vsub.s32 0, %v326
    %v328 = vrot.slane %v323, %v327
    %v329 = vlaneseq
    %v330 = vshrl.u32 %v329, 7
    %v331 = vsub.s32 1, %v330
    %v332 = vrot.slane %v323, %v331
    %v333 = vlaneseq
    %v334 = vshrl.u32 %v333, 7
    %v335 = vsub.s32 2, %v334
    %v336 = vrot.slane %v323, %v335
    %v337 = vlaneseq
    %v338 = vshrl.u32 %v337, 7
    %v339 = vsub.s32 3, %v338
    %v340 = vrot.slane %v323, %v339
    %v341 = vlaneseq
    %v342 = vshrl.u32 %v341, 7
    %v343 = vsub.s32 4, %v342
    %v344 = vrot.slane %v323, %v343
    %v345 = vlaneseq
    %v346 = vshrl.u32 %v345, 7
    %v347 = vsub.s32 5, %v346
    %v348 = vrot.slane %v323, %v347
    %v451 = vunpack.c.l.b16 %v227
    %v452 = vunpack.c.h.b16 %v227
    %v453 = vunpack.c.l.b16 %v228
    %v454 = vunpack.c.h.b16 %v228
    %v455 = vunpack.c.l.b16 %v229
    %v456 = vunpack.c.h.b16 %v229
    %v457 = vunpack.c.l.b16 %v230
    %v458 = vunpack.c.h.b16 %v230
    %v459 = vunpack.c.l.b16 %v231
    %v460 = vunpack.c.h.b16 %v231
    %v461 = vunpack.c.l.b16 %v232
    %v462 = vunpack.c.h.b16 %v232
    %v463 = vunpack.c.l.b16 %v233
    %v464 = vunpack.c.h.b16 %v233
    %v465 = vunpack.c.l.b16 %v234
    %v466 = vunpack.c.h.b16 %v234
    %v467 = vunpack.c.l.b16 %v235
    %v468 = vunpack.c.h.b16 %v235
    %v469 = vunpack.c.l.b16 %v236
    %v470 = vunpack.c.h.b16 %v236
    %v471 = vunpack.c.l.b16 %v237
    %v472 = vunpack.c.h.b16 %v237
    %v473 = vunpack.c.l.b16 %v238
    %v474 = vunpack.c.h.b16 %v238
    %v475 = vunpack.c.l.b16 %v239
    %v476 = vunpack.c.h.b16 %v239
    %v477 = vunpack.c.l.b16 %v240
    %v478 = vunpack.c.h.b16 %v240
    %v479 = vunpack.c.l.b16 %v241
    %v480 = vunpack.c.h.b16 %v241
    %v481 = vunpack.c.l.b16 %v242
    %v482 = vunpack.c.h.b16 %v242
    %v483 = vunpack.c.l.b16 %v243
    %v484 = vunpack.c.h.b16 %v243
    %v485 = vunpack.c.l.b16 %v244
    %v486 = vunpack.c.h.b16 %v244
    %v487 = vunpack.c.l.b16 %v245
    %v488 = vunpack.c.h.b16 %v245
    %v489 = vunpack.c.l.b16 %v246
    %v490 = vunpack.c.h.b16 %v246
    %v491 = vunpack.c.l.b16 %v247
    %v492 = vunpack.c.h.b16 %v247
    %v493 = vunpack.c.l.b16 %v248
    %v494 = vunpack.c.h.b16 %v248
    %v495 = vunpack.c.l.b16 %v249
    %v496 = vunpack.c.h.b16 %v249
    %v497 = vunpack.c.l.b16 %v250
    %v498 = vunpack.c.h.b16 %v250
    %v499 = vunpack.c.l.b16 %v251
    %v500 = vunpack.c.h.b16 %v251
    %v501 = vunpack.c.l.b16 %v252
    %v502 = vunpack.c.h.b16 %v252
    %v503 = vunpack.c.l.b16 %v253
    %v504 = vunpack.c.h.b16 %v253
    %v505 = vunpack.c.l.b16 %v254
    %v506 = vunpack.c.h.b16 %v254
    %v507 = vunpack.c.l.b16 %v255
    %v508 = vunpack.c.h.b16 %v255
    %v509 = vunpack.c.l.b16 %v256
    %v510 = vunpack.c.h.b16 %v256
    %v511 = vunpack.c.l.b16 %v257
    %v512 = vunpack.c.h.b16 %v257
    %v513 = vunpack.c.l.b16 %v258
    %v514 = vunpack.c.h.b16 %v258
    %v515 = vunpack.c.l.b16 %v259
    %v516 = vunpack.c.h.b16 %v259
    %v517 = vunpack.c.l.b16 %v260
    %v518 = vunpack.c.h.b16 %v260
    %v519 = vunpack.c.l.b16 %v261
    %v520 = vunpack.c.h.b16 %v261
    %v521 = vunpack.c.l.b16 %v262
    %v522 = vunpack.c.h.b16 %v262
    %v523 = vunpack.c.l.b16 %v263
    %v524 = vunpack.c.h.b16 %v263
    %v525 = vunpack.c.l.b16 %v264
    %v526 = vunpack.c.h.b16 %v264
    %v527 = vunpack.c.l.b16 %v265
    %v528 = vunpack.c.h.b16 %v265
    %v529 = vunpack.c.l.b16 %v266
    %v530 = vunpack.c.h.b16 %v266
    %v531 = vunpack.c.l.b16 %v267
    %v532 = vunpack.c.h.b16 %v267
    %v533 = vunpack.c.l.b16 %v268
    %v534 = vunpack.c.h.b16 %v268
    %v535 = vunpack.c.l.b16 %v269
    %v536 = vunpack.c.h.b16 %v269
    %v537 = vunpack.c.l.b16 %v270
    %v538 = vunpack.c.h.b16 %v270
    %v539 = vunpack.c.l.b16 %v271
    %v540 = vunpack.c.h.b16 %v271
    %v541 = vunpack.c.l.b16 %v272
    %v542 = vunpack.c.h.b16 %v272
    %v543 = vunpack.c.l.b16 %v273
    %v544 = vunpack.c.h.b16 %v273
    %v545 = vunpack.c.l.b16 %v274
    %v546 = vunpack.c.h.b16 %v274
    %v547 = vunpack.c.l.b16 %v275
    %v548 = vunpack.c.h.b16 %v275
    %v549 = vunpack.c.l.b16 %v276
    %v550 = vunpack.c.h.b16 %v276
    %v551 = vunpack.c.l.b16 %v277
    %v552 = vunpack.c.h.b16 %v277
    %v553 = vunpack.c.l.b16 %v278
    %v554 = vunpack.c.h.b16 %v278
    %v555 = vunpack.c.l.b16 %v279
    %v556 = vunpack.c.h.b16 %v279
    %v557 = vunpack.c.l.b16 %v280
    %v558 = vunpack.c.h.b16 %v280
    %v559 = vunpack.c.l.b16 %v281
    %v560 = vunpack.c.h.b16 %v281
    %v561 = vunpack.c.l.b16 %v282
    %v562 = vunpack.c.h.b16 %v282
    %v563 = vunpack.c.l.b16 %v283
    %v564 = vunpack.c.h.b16 %v283
    %v565 = vunpack.c.l.b16 %v284
    %v566 = vunpack.c.h.b16 %v284
    %v567 = vunpack.c.l.b16 %v285
    %v568 = vunpack.c.h.b16 %v285
    %v569 = vunpack.c.l.b16 %v286
    %v570 = vunpack.c.h.b16 %v286
    %v571 = vunpack.c.l.b16 %v287
    %v572 = vunpack.c.h.b16 %v287
    %v573 = vunpack.c.l.b16 %v288
    %v574 = vunpack.c.h.b16 %v288
    %v575 = vunpack.c.l.b16 %v289
    %v576 = vunpack.c.h.b16 %v289
    %v577 = vunpack.c.l.b16 %v290
    %v578 = vunpack.c.h.b16 %v290
    %v579 = vunpack.c.l.b16 %v291
    %v580 = vunpack.c.h.b16 %v291
    %v581 = vunpack.c.l.b16 %v292
    %v582 = vunpack.c.h.b16 %v292
    %v583 = vunpack.c.l.b16 %v293
    %v584 = vunpack.c.h.b16 %v293
    %v585 = vunpack.c.l.b16 %v294
    %v586 = vunpack.c.h.b16 %v294
    %v587 = vunpack.c.l.b16 %v295
    %v588 = vunpack.c.h.b16 %v295
    %v589 = vunpack.c.l.b16 %v296
    %v590 = vunpack.c.h.b16 %v296
    %v591 = vunpack.c.l.b16 %v297
    %v592 = vunpack.c.h.b16 %v297
    %v593 = vunpack.c.l.b16 %v298
    %v594 = vunpack.c.h.b16 %v298
    %v595 = vunpack.c.l.b16 %v299
    %v596 = vunpack.c.h.b16 %v299
    %v597 = vunpack.c.l.b16 %v300
    %v598 = vunpack.c.h.b16 %v300
    %v599 = vunpack.c.l.b16 %v301
    %v600 = vunpack.c.h.b16 %v301
    %v601 = vunpack.c.l.b16 %v302
    %v602 = vunpack.c.h.b16 %v302
    %v603 = vunpack.c.l.b16 %v303
    %v604 = vunpack.c.h.b16 %v303
    %v605 = vunpack.c.l.b16 %v304
    %v606 = vunpack.c.h.b16 %v304
    %v607 = vunpack.c.l.b16 %v305
    %v608 = vunpack.c.h.b16 %v305
    %v609 = vunpack.c.l.b16 %v306
    %v610 = vunpack.c.h.b16 %v306
    %v611 = vunpack.c.l.b16 %v307
    %v612 = vunpack.c.h.b16 %v307
    %v613 = vunpack.c.l.b16 %v308
    %v614 = vunpack.c.h.b16 %v308
    %v615 = vunpack.c.l.b16 %v309
    %v616 = vunpack.c.h.b16 %v309
    %v617 = vunpack.c.l.b16 %v310
    %v618 = vunpack.c.h.b16 %v310
    %v619 = vunpack.c.l.b16 %v311
    %v620 = vunpack.c.h.b16 %v311
    %v621 = vunpack.c.l.b16 %v312
    %v622 = vunpack.c.h.b16 %v312
    %v623 = vunpack.c.l.b16 %v313
    %v624 = vunpack.c.h.b16 %v313
    %v625 = vunpack.c.l.b16 %v314
    %v626 = vunpack.c.h.b16 %v314
    %v627 = vunpack.c.l.b16 %v315
    %v628 = vunpack.c.h.b16 %v315
    %v629 = vunpack.c.l.b16 %v316
    %v630 = vunpack.c.h.b16 %v316
    %v631 = vunpack.c.l.b16 %v317
    %v632 = vunpack.c.h.b16 %v317
    %v633 = vunpack.c.l.b16 %v318
    %v634 = vunpack.c.h.b16 %v318
    %v635 = vunpack.c.l.b16 %v319
    %v636 = vunpack.c.h.b16 %v319
    %v637 = vunpack.c.l.b16 %v320
    %v638 = vunpack.c.h.b16 %v320
    %v639 = vunpack.c.l.b16 %v321
    %v640 = vunpack.c.h.b16 %v321
    %v641 = vunpack.c.l.b16 %v322
    %v642 = vunpack.c.h.b16 %v322
    %v643 = vpack.c.b16 %v457, %v451
    %v644 = vpack.c.b16 %v458, %v452
    %v645 = vpack.c.b16 %v459, %v453
    %v646 = vpack.c.b16 %v460, %v454
    %v647 = vpack.c.b16 %v461, %v455
    %v648 = vpack.c.b16 %v462, %v456
    %v649 = vpack.c.b16 %v469, %v463
    %v650 = vpack.c.b16 %v470, %v464
    %v651 = vpack.c.b16 %v471, %v465
    %v652 = vpack.c.b16 %v472, %v466
    %v653 = vpack.c.b16 %v473, %v467
    %v654 = vpack.c.b16 %v474, %v468
    %v655 = vpack.c.b16 %v481, %v475
    %v656 = vpack.c.b16 %v482, %v476
    %v657 = vpack.c.b16 %v483, %v477
    %v658 = vpack.c.b16 %v484, %v478
    %v659 = vpack.c.b16 %v485, %v479
    %v660 = vpack.c.b16 %v486, %v480
    %v661 = vpack.c.b16 %v493, %v487
    %v662 = vpack.c.b16 %v494, %v488
    %v663 = vpack.c.b16 %v495, %v489
    %v664 = vpack.c.b16 %v496, %v490
    %v665 = vpack.c.b16 %v497, %v491
    %v666 = vpack.c.b16 %v498, %v492
    %v667 = vpack.c.b16 %v505, %v499
    %v668 = vpack.c.b16 %v506, %v500
    %v669 = vpack.c.b16 %v507, %v501
    %v670 = vpack.c.b16 %v508, %v502
    %v671 = vpack.c.b16 %v509, %v503
    %v672 = vpack.c.b16 %v510, %v504
    %v673 = vpack.c.b16 %v517, %v511
    %v674 = vpack.c.b16 %v518, %v512
    %v675 = vpack.c.b16 %v519, %v513
    %v676 = vpack.c.b16 %v520, %v514
    %v677 = vpack.c.b16 %v521, %v515
    %v678 = vpack.c.b16 %v522, %v516
    %v679 = vpack.c.b16 %v529, %v523
    %v680 = vpack.c.b16 %v530, %v524
    %v681 = vpack.c.b16 %v531, %v525
    %v682 = vpack.c.b16 %v532, %v526
    %v683 = vpack.c.b16 %v533, %v527
    %v684 = vpack.c.b16 %v534, %v528
    %v685 = vpack.c.b16 %v541, %v535
    %v686 = vpack.c.b16 %v542, %v536
    %v687 = vpack.c.b16 %v543, %v537
    %v688 = vpack.c.b16 %v544, %v538
    %v689 = vpack.c.b16 %v545, %v539
    %v690 = vpack.c.b16 %v546, %v540
    %v691 = vpack.c.b16 %v553, %v547
    %v692 = vpack.c.b16 %v554, %v548
    %v693 = vpack.c.b16 %v555, %v549
    %v694 = vpack.c.b16 %v556, %v550
    %v695 = vpack.c.b16 %v557, %v551
    %v696 = vpack.c.b16 %v558, %v552
    %v697 = vpack.c.b16 %v565, %v559
    %v698 = vpack.c.b16 %v566, %v560
    %v699 = vpack.c.b16 %v567, %v561
    %v700 = vpack.c.b16 %v568, %v562
    %v701 = vpack.c.b16 %v569, %v563
    %v702 = vpack.c.b16 %v570, %v564
    %v703 = vpack.c.b16 %v577, %v571
    %v704 = vpack.c.b16 %v578, %v572
    %v705 = vpack.c.b16 %v579, %v573
    %v706 = vpack.c.b16 %v580, %v574
    %v707 = vpack.c.b16 %v581, %v575
    %v708 = vpack.c.b16 %v582, %v576
    %v709 = vpack.c.b16 %v589, %v583
    %v710 = vpack.c.b16 %v590, %v584
    %v711 = vpack.c.b16 %v591, %v585
    %v712 = vpack.c.b16 %v592, %v586
    %v713 = vpack.c.b16 %v593, %v587
    %v714 = vpack.c.b16 %v594, %v588
    %v715 = vpack.c.b16 %v601, %v595
    %v716 = vpack.c.b16 %v602, %v596
    %v717 = vpack.c.b16 %v603, %v597
    %v718 = vpack.c.b16 %v604, %v598
    %v719 = vpack.c.b16 %v605, %v599
    %v720 = vpack.c.b16 %v606, %v600
    %v721 = vpack.c.b16 %v613, %v607
    %v722 = vpack.c.b16 %v614, %v608
    %v723 = vpack.c.b16 %v615, %v609
    %v724 = vpack.c.b16 %v616, %v610
    %v725 = vpack.c.b16 %v617, %v611
    %v726 = vpack.c.b16 %v618, %v612
    %v727 = vpack.c.b16 %v625, %v619
    %v728 = vpack.c.b16 %v626, %v620
    %v729 = vpack.c.b16 %v627, %v621
    %v730 = vpack.c.b16 %v628, %v622
    %v731 = vpack.c.b16 %v629, %v623
    %v732 = vpack.c.b16 %v630, %v624
    %v733 = vpack.c.b16 %v637, %v631
    %v734 = vpack.c.b16 %v638, %v632
    %v735 = vpack.c.b16 %v639, %v633
    %v736 = vpack.c.b16 %v640, %v634
    %v737 = vpack.c.b16 %v641, %v635
    %v738 = vpack.c.b16 %v642, %v636
    %835 = vmatprep.subr.bf16.mxu0 %v686
    %836 = vmatpush1.bf16.msra.mxu0 %v685
    %837 = vmatprep.subr.bf16.mxu0 %v680
    %838 = vmatpush1.bf16.msra.mxu0 %v679
    %839 = vmatprep.subr.bf16.mxu0 %v674
    %840 = vmatpush1.bf16.msra.mxu0 %v673
    %841 = vmatprep.subr.bf16.mxu0 %v668
    %842 = vmatpush1.bf16.msra.mxu0 %v667
    %843 = vmatprep.subr.bf16.mxu0 %v662
    %844 = vmatpush1.bf16.msra.mxu0 %v661
    %845 = vmatprep.subr.bf16.mxu0 %v656
    %846 = vmatpush1.bf16.msra.mxu0 %v655
    %847 = vmatprep.subr.bf16.mxu0 %v650
    %848 = vmatpush1.bf16.msra.mxu0 %v649
    %849 = vmatprep.subr.bf16.mxu0 %v644
    %850 = vmatpush1.bf16.msra.mxu0 %v643
    %851 = vmatprep.subr.bf16.mxu0 %v734
    %852 = vmatpush2.bf16.msra.mxu0 %v733
    %853 = vmatprep.subr.bf16.mxu0 %v728
    %854 = vmatpush2.bf16.msra.mxu0 %v727
    %855 = vmatprep.subr.bf16.mxu0 %v722
    %856 = vmatpush2.bf16.msra.mxu0 %v721
    %857 = vmatprep.subr.bf16.mxu0 %v716
    %858 = vmatpush2.bf16.msra.mxu0 %v715
    %859 = vmatprep.subr.bf16.mxu0 %v710
    %860 = vmatpush2.bf16.msra.mxu0 %v709
    %861 = vmatprep.subr.bf16.mxu0 %v704
    %862 = vmatpush2.bf16.msra.mxu0 %v703
    %863 = vmatprep.subr.bf16.mxu0 %v698
    %864 = vmatpush2.bf16.msra.mxu0 %v697
    %865 = vmatprep.subr.bf16.mxu0 %v692
    %866 = vmatpush2.bf16.msra.mxu0 %v691
    %867 = vmatprep.mubr.bf16.mxu0 %v226
    %868 = vmatmul.mubr.bf16.gmra.mxu0 %v225
    %v869 = vpop.f32.mrf.mxu0
    %v870 = vadd.f32 %v328, %v869
    %v871 = vpop.f32.mrf.mxu0
    %v872 = vadd.f32 %v332, %v871
    %v873 = vpop.f32.mrf.mxu0
    %v874 = vpop.f32.mrf.mxu0
    %875 = vdwg.mxu0
    %876 = vmatprep.subr.bf16.mxu0 %v688
    %877 = vmatpush1.bf16.msra.mxu0 %v687
    %878 = vmatprep.subr.bf16.mxu0 %v682
    %879 = vmatpush1.bf16.msra.mxu0 %v681
    %880 = vmatprep.subr.bf16.mxu0 %v676
    %881 = vmatpush1.bf16.msra.mxu0 %v675
    %882 = vmatprep.subr.bf16.mxu0 %v670
    %883 = vmatpush1.bf16.msra.mxu0 %v669
    %884 = vmatprep.subr.bf16.mxu0 %v664
    %885 = vmatpush1.bf16.msra.mxu0 %v663
    %886 = vmatprep.subr.bf16.mxu0 %v658
    %887 = vmatpush1.bf16.msra.mxu0 %v657
    %888 = vmatprep.subr.bf16.mxu0 %v652
    %889 = vmatpush1.bf16.msra.mxu0 %v651
    %890 = vmatprep.subr.bf16.mxu0 %v646
    %891 = vmatpush1.bf16.msra.mxu0 %v645
    %892 = vmatprep.subr.bf16.mxu0 %v736
    %893 = vmatpush2.bf16.msra.mxu0 %v735
    %894 = vmatprep.subr.bf16.mxu0 %v730
    %895 = vmatpush2.bf16.msra.mxu0 %v729
    %896 = vmatprep.subr.bf16.mxu0 %v724
    %897 = vmatpush2.bf16.msra.mxu0 %v723
    %898 = vmatprep.subr.bf16.mxu0 %v718
    %899 = vmatpush2.bf16.msra.mxu0 %v717
    %900 = vmatprep.subr.bf16.mxu0 %v712
    %901 = vmatpush2.bf16.msra.mxu0 %v711
    %902 = vmatprep.subr.bf16.mxu0 %v706
    %903 = vmatpush2.bf16.msra.mxu0 %v705
    %904 = vmatprep.subr.bf16.mxu0 %v700
    %905 = vmatpush2.bf16.msra.mxu0 %v699
    %906 = vmatprep.subr.bf16.mxu0 %v694
    %907 = vmatpush2.bf16.msra.mxu0 %v693
    %908 = vmatprep.mubr.bf16.mxu0 %v226
    %909 = vmatmul.mubr.bf16.gmra.mxu0 %v225
    %v910 = vpop.f32.mrf.mxu0
    %v911 = vadd.f32 %v336, %v910
    %v912 = vpop.f32.mrf.mxu0
    %v913 = vadd.f32 %v340, %v912
    %v914 = vpop.f32.mrf.mxu0
    %v915 = vpop.f32.mrf.mxu0
    %916 = vdwg.mxu0
    %917 = vmatprep.subr.bf16.mxu0 %v690
    %918 = vmatpush1.bf16.msra.mxu0 %v689
    %919 = vmatprep.subr.bf16.mxu0 %v684
    %920 = vmatpush1.bf16.msra.mxu0 %v683
    %921 = vmatprep.subr.bf16.mxu0 %v678
    %922 = vmatpush1.bf16.msra.mxu0 %v677
    %923 = vmatprep.subr.bf16.mxu0 %v672
    %924 = vmatpush1.bf16.msra.mxu0 %v671
    %925 = vmatprep.subr.bf16.mxu0 %v666
    %926 = vmatpush1.bf16.msra.mxu0 %v665
    %927 = vmatprep.subr.bf16.mxu0 %v660
    %928 = vmatpush1.bf16.msra.mxu0 %v659
    %929 = vmatprep.subr.bf16.mxu0 %v654
    %930 = vmatpush1.bf16.msra.mxu0 %v653
    %931 = vmatprep.subr.bf16.mxu0 %v648
    %932 = vmatpush1.bf16.msra.mxu0 %v647
    %933 = vmatprep.subr.bf16.mxu0 %v738
    %934 = vmatpush2.bf16.msra.mxu0 %v737
    %935 = vmatprep.subr.bf16.mxu0 %v732
    %936 = vmatpush2.bf16.msra.mxu0 %v731
    %937 = vmatprep.subr.bf16.mxu0 %v726
    %938 = vmatpush2.bf16.msra.mxu0 %v725
    %939 = vmatprep.subr.bf16.mxu0 %v720
    %940 = vmatpush2.bf16.msra.mxu0 %v719
    %941 = vmatprep.subr.bf16.mxu0 %v714
    %942 = vmatpush2.bf16.msra.mxu0 %v713
    %943 = vmatprep.subr.bf16.mxu0 %v708
    %944 = vmatpush2.bf16.msra.mxu0 %v707
    %945 = vmatprep.subr.bf16.mxu0 %v702
    %946 = vmatpush2.bf16.msra.mxu0 %v701
    %947 = vmatprep.subr.bf16.mxu0 %v696
    %948 = vmatpush2.bf16.msra.mxu0 %v695
    %949 = vmatprep.mubr.bf16.mxu0 %v226
    %950 = vmatmul.mubr.bf16.gmra.mxu0 %v225
    %v951 = vpop.f32.mrf.mxu0
    %v952 = vadd.f32 %v344, %v951
    %v953 = vpop.f32.mrf.mxu0
    %v954 = vadd.f32 %v348, %v953
    %v955 = vpop.f32.mrf.mxu0
    %v956 = vpop.f32.mrf.mxu0
    %957 = vdwg.mxu0
    %v958 = vtanh.pop %v870
    %v959 = vtanh.pop %v872
    %v960 = vtanh.pop %v911
    %v961 = vtanh.pop %v913
    %v962 = vtanh.pop %v952
    %v963 = vtanh.pop %v954
    %964 = vst [vmem:[#allocation10] sm:$0xff] %v958
    %965 = vst [vmem:[#allocation10 + $0x8] sm:$0xff] %v959
    %966 = vst [vmem:[#allocation10 + $0x10] sm:$0xff] %v960
    %967 = vst [vmem:[#allocation10 + $0x18] sm:$0xff] %v961
    %968 = vst [vmem:[#allocation10 + $0x20] sm:$0xff] %v962
    %969 = vst [vmem:[#allocation10 + $0x28] sm:$0xff] %v963
    // Predicated region
    $region38: #{tpu_custom_call.1} parent=1 // pred_check
      _
    $region39: #{tpu_custom_call.1} parent=1 // pred_check_branch
      %971 = sbr.rel (0) target = $region41
    $region40: #{tpu_custom_call.1} parent=1 // pred_region
      %s973 = ssub.s32 768, 768
      %974 = vsyncadd [#allocation4], %s973
      %s976 = sshll.u32 [#allocation10], 4
      %s977 = int_to_ptr.vmem [resolvable:$true] %s976
      %979 = dma.vmem_to_hbm [thread:$0]  %s977, 768, %s5, [#allocation4]
    $region41: #{tpu_custom_call.1} parent=1 // pred_fallthru
      _
    // Predicated region
    $region42: #{tpu_custom_call.1} parent=1 // pred_check
      _
    $region43: #{tpu_custom_call.1} parent=1 // pred_check_branch
      %981 = sbr.rel (0) target = $region45
    $region44: #{tpu_custom_call.1} parent=1 // pred_region
      %982 = dma.done [#allocation4], 768
    $region45: #{tpu_custom_call.1} parent=1 // pred_fallthru
      _
    %983 = vsyncpa [#allocation3], 1
    %984 = vsyncpa [#allocation6], 1
    %985 = vsyncpa [#allocation9], 1
    %986 = vsyncpa [#allocation4], 1

</llo_original>
